<compile_context>
chip_gen: v7x
topology: tpu7x:2x2x1
jax: 0.10.0
libtpu: 0.0.40
codegen_flags: <defaults>
</compile_context>

<pallas_src>
import jax
import jax.numpy as jnp
from jax.experimental import pallas as pl
from jax.experimental.pallas import tpu as pltpu

MAX_TILE_ROWS = 8192    # upper bound on original rows per grid step
MIN_GRID_STEPS = 4      # aim for >=4 grid steps (megacore + pipelining)


def ae_block_kernel(
    x_ref,
    ew0_ref, eb0_ref, ew1_ref, eb1_ref, ew2_ref, eb2_ref,
    dw0_ref, db0_ref, dw1_ref, db1_ref, dw2_ref, db2_ref, dw3_ref, db3_ref,
    latent_ref, recon_ref,
):
    """One row tile of the autoencoder (lane-folded layout).

    x_ref holds f32 rows; the f32->bf16 cast happens here (per tile) so the
    wrapper never adds an extra HBM pass.  Weights are bf16 block-diagonal
    folds, biases f32.  Matmuls run on the MXU with f32 accumulation.
    """

    def linear(h_bf16, w_ref, b_ref):
        return jnp.dot(h_bf16, w_ref[...],
                       preferred_element_type=jnp.float32) + b_ref[...]

    def relu_bf16(y_f32):
        # ReLU in f32, narrow back to bf16 for the next MXU pass.
        return jnp.maximum(y_f32, 0.0).astype(jnp.bfloat16)

    x = x_ref[...].astype(jnp.bfloat16)                  # (SM, FOLD*F)

    # ---------------- encoder: (Linear -> ReLU) x 3 ----------------
    h = relu_bf16(linear(x, ew0_ref, eb0_ref))
    h = relu_bf16(linear(h, ew1_ref, eb1_ref))
    latent_f32 = jnp.maximum(linear(h, ew2_ref, eb2_ref), 0.0)
    latent_ref[...] = latent_f32.astype(latent_ref.dtype)

    # ------------- decoder: (Linear -> ReLU) x 3, final Linear -------------
    h = relu_bf16(linear(latent_f32.astype(jnp.bfloat16), dw0_ref, db0_ref))
    h = relu_bf16(linear(h, dw1_ref, db1_ref))
    h = relu_bf16(linear(h, dw2_ref, db2_ref))
    recon_ref[...] = linear(h, dw3_ref, db3_ref).astype(recon_ref.dtype)


def _round_up(v, m):
    return ((v + m - 1) // m) * m


def _pick_fold(rows, max_fold=4):
    """Largest fold in {4, 2, 1} that divides the row count (so no padding)."""
    for f in (max_fold, 2, 1):
        if rows % f == 0:
            return f
    return 1


def _pick_super_rows_per_tile(n_super, fold):
    """Tile size in super-rows: multiple of 8 (sublane) or the full extent."""
    if n_super <= 8:
        return n_super                      # single full-extent block
    sm_cap = max(8, MAX_TILE_ROWS // fold)
    target = pl.cdiv(n_super, MIN_GRID_STEPS)
    return max(8, min(sm_cap, _round_up(target, 8)))


def _fold_params(params, fold):
    """(in,out) weights -> block-diagonal kron(I_fold, W) in bf16; biases tiled.

    Exact: [r0|r1|...|r_{fold-1}] @ kron(I_fold, W) == [r0@W | ... | r_{fold-1}@W].
    """
    eye = jnp.eye(fold, dtype=jnp.float32)
    folded = []
    for idx in range(0, len(params), 2):
        w, b = params[idx], params[idx + 1]
        if fold == 1:
            wf, bf = w, b
        else:
            wf = jnp.kron(eye, w)                    # (fold*in, fold*out)
            bf = jnp.tile(b, (1, fold))              # (1, fold*out)
        folded.append(wf.astype(jnp.bfloat16))
        folded.append(bf.astype(jnp.float32))
    return tuple(folded)


def ae_block_forward(x_meteo, params):
    """x_meteo: (B, T, F) f32. Returns (latent (B, T, latent_dim), recon (B, T, F))."""
    B, T, F = x_meteo.shape
    rows = B * T
    latent_dim = params[4].shape[1]   # ew2: (e1, e2)
    out_dim = params[12].shape[1]     # dw3: (d2, input_size)
    assert out_dim == F

    fold = _pick_fold(rows)
    n_super = rows // fold
    sm = _pick_super_rows_per_tile(n_super, fold)
    grid = (pl.cdiv(n_super, sm),)

    # Contiguous, metadata-only reshape; dtype stays f32 (cast happens in-kernel).
    x_fold = x_meteo.reshape(n_super, fold * F)
    fparams = _fold_params(params, fold)

    x_spec = pl.BlockSpec((sm, fold * F), lambda i: (i, 0))
    # Constant block index -> weights/biases fetched once, VMEM-resident.
    w_specs = [pl.BlockSpec(p.shape, lambda i: (0, 0)) for p in fparams]
    latent_spec = pl.BlockSpec((sm, fold * latent_dim), lambda i: (i, 0))
    recon_spec = pl.BlockSpec((sm, fold * F), lambda i: (i, 0))

    flops = sum(2 * n_super * fparams[k].shape[0] * fparams[k].shape[1]
                for k in range(0, len(fparams), 2))
    param_bytes = sum(int(p.size) * p.dtype.itemsize for p in fparams)
    bytes_accessed = (int(x_fold.size) * 4 + param_bytes
                      + rows * latent_dim * 4 + rows * F * 4)

    latent_fold, recon_fold = pl.pallas_call(
        ae_block_kernel,
        grid=grid,
        out_shape=(
            jax.ShapeDtypeStruct((n_super, fold * latent_dim), jnp.float32),
            jax.ShapeDtypeStruct((n_super, fold * F), jnp.float32),
        ),
        in_specs=[x_spec] + w_specs,
        out_specs=(latent_spec, recon_spec),
        compiler_params=pltpu.CompilerParams(
            dimension_semantics=("parallel",),     # megacore sharding on v7x
            vmem_limit_bytes=32 * 1024 * 1024,     # ample; safe on all gens
        ),
        cost_estimate=pl.CostEstimate(
            flops=int(flops), transcendentals=0,
            bytes_accessed=int(bytes_accessed)),
    )(x_fold, *fparams)

    # Contiguous reshapes back (pure metadata, no HBM pass).
    latent = latent_fold.reshape(B, T, latent_dim)
    recon = recon_fold.reshape(B, T, F)
    return latent, recon


def init_params(key, input_size, struct_encoder, struct_decoder):
    """Deterministic init; weights stored as (in, out) = transposed PyTorch layout."""
    dims = [
        (input_size, struct_encoder[0]),
        (struct_encoder[0], struct_encoder[1]),
        (struct_encoder[1], struct_encoder[2]),
        (struct_decoder[0], struct_decoder[0]),
        (struct_decoder[0], struct_decoder[1]),
        (struct_decoder[1], struct_decoder[2]),
        (struct_decoder[2], input_size),
    ]
    params = []
    for (din, dout) in dims:
        key, wk, bk = jax.random.split(key, 3)
        bound = 1.0 / jnp.sqrt(din)
        params.append(jax.random.uniform(wk, (din, dout), jnp.float32, -bound, bound))
        params.append(jax.random.uniform(bk, (1, dout), jnp.float32, -bound, bound))
    return tuple(params)


def reference_forward(x_meteo, params):
    """Plain-JAX reference mirroring the kernel's bf16-operand / f32-accum math."""
    (ew0, eb0, ew1, eb1, ew2, eb2,
     dw0, db0, dw1, db1, dw2, db2, dw3, db3) = params

    def lin(h, w, b):
        return jnp.dot(h.astype(jnp.bfloat16), w.astype(jnp.bfloat16),
                       preferred_element_type=jnp.float32) + b[0]

    relu = lambda v: jnp.maximum(v, 0.0)
    h = relu(lin(x_meteo, ew0, eb0))
    h = relu(lin(h, ew1, eb1))
    latent = relu(lin(h, ew2, eb2))
    h = relu(lin(latent, dw0, db0))
    h = relu(lin(h, dw1, db1))
    h = relu(lin(h, dw2, db2))
    recon = lin(h, dw3, db3)
    return latent, recon


if __name__ == "__main__":
    # Small synthetic config consistent with the module.
    num_features = 4
    num_stations = 8
    input_size = num_features * num_stations          # 32
    struct_encoder = [64, 32, 16]
    struct_decoder = [16, 32, 64]                      # decoder[0] == encoder[2]

    key = jax.random.PRNGKey(0)
    key, pkey = jax.random.split(key)
    params = init_params(pkey, input_size, struct_encoder, struct_decoder)

    # (2, 8): tiny input -> single full-extent block, no padding / dead work.
    # (8, 32): 256 rows -> 64 super-rows, sm=16, 4-step parallel grid
    # (exercises the multi-step pipelined path).
    for (batch, input_len) in [(2, 8), (8, 32)]:
        key, xkey = jax.random.split(key)
        x_meteo = jax.random.normal(
            xkey, (batch, input_len, input_size), jnp.float32)

        latent, recon = ae_block_forward(x_meteo, params)
        jax.block_until_ready((latent, recon))

        ref_latent, ref_recon = reference_forward(x_meteo, params)
        assert latent.shape == (batch, input_len, struct_encoder[2])
        assert recon.shape == (batch, input_len, input_size)
        assert jnp.allclose(latent, ref_latent, atol=1e-3, rtol=1e-3)
        assert jnp.allclose(recon, ref_recon, atol=1e-3, rtol=1e-3)

    print("KERNEL_OK")
</pallas_src>

<mosaic_0001>
module attributes {stable_mosaic.version = 11 : i64} {
  func.func @ae_block_kernel(%arg0: i32, %arg1: memref<4x128xf32, #tpu.memory_space<vmem>>, %arg2: memref<128x256xbf16, #tpu.memory_space<vmem>>, %arg3: memref<1x256xf32, #tpu.memory_space<vmem>>, %arg4: memref<256x128xbf16, #tpu.memory_space<vmem>>, %arg5: memref<1x128xf32, #tpu.memory_space<vmem>>, %arg6: memref<128x64xbf16, #tpu.memory_space<vmem>>, %arg7: memref<1x64xf32, #tpu.memory_space<vmem>>, %arg8: memref<64x64xbf16, #tpu.memory_space<vmem>>, %arg9: memref<1x64xf32, #tpu.memory_space<vmem>>, %arg10: memref<64x128xbf16, #tpu.memory_space<vmem>>, %arg11: memref<1x128xf32, #tpu.memory_space<vmem>>, %arg12: memref<128x256xbf16, #tpu.memory_space<vmem>>, %arg13: memref<1x256xf32, #tpu.memory_space<vmem>>, %arg14: memref<256x128xbf16, #tpu.memory_space<vmem>>, %arg15: memref<1x128xf32, #tpu.memory_space<vmem>>, %arg16: memref<4x64xf32, #tpu.memory_space<vmem>>, %arg17: memref<4x128xf32, #tpu.memory_space<vmem>>) attributes {dimension_semantics = [#tpu.dimension_semantics<parallel>], iteration_bounds = array<i64: 1>, scalar_prefetch = 0 : i64, scratch_operands = 0 : i64, tpu.core_type = #tpu.core_type<tc>, window_params = [{transform_indices = @transform_0, window_bounds = array<i64: 4, 128>}, {pipeline_mode = #tpu.pipeline_mode<synchronous>, transform_indices = @transform_1, window_bounds = array<i64: 128, 256>}, {pipeline_mode = #tpu.pipeline_mode<synchronous>, transform_indices = @transform_2, window_bounds = array<i64: 1, 256>}, {pipeline_mode = #tpu.pipeline_mode<synchronous>, transform_indices = @transform_3, window_bounds = array<i64: 256, 128>}, {pipeline_mode = #tpu.pipeline_mode<synchronous>, transform_indices = @transform_4, window_bounds = array<i64: 1, 128>}, {pipeline_mode = #tpu.pipeline_mode<synchronous>, transform_indices = @transform_5, window_bounds = array<i64: 128, 64>}, {pipeline_mode = #tpu.pipeline_mode<synchronous>, transform_indices = @transform_6, window_bounds = array<i64: 1, 64>}, {pipeline_mode = #tpu.pipeline_mode<synchronous>, transform_indices = @transform_7, window_bounds = array<i64: 64, 64>}, {pipeline_mode = #tpu.pipeline_mode<synchronous>, transform_indices = @transform_8, window_bounds = array<i64: 1, 64>}, {pipeline_mode = #tpu.pipeline_mode<synchronous>, transform_indices = @transform_9, window_bounds = array<i64: 64, 128>}, {pipeline_mode = #tpu.pipeline_mode<synchronous>, transform_indices = @transform_10, window_bounds = array<i64: 1, 128>}, {pipeline_mode = #tpu.pipeline_mode<synchronous>, transform_indices = @transform_11, window_bounds = array<i64: 128, 256>}, {pipeline_mode = #tpu.pipeline_mode<synchronous>, transform_indices = @transform_12, window_bounds = array<i64: 1, 256>}, {pipeline_mode = #tpu.pipeline_mode<synchronous>, transform_indices = @transform_13, window_bounds = array<i64: 256, 128>}, {pipeline_mode = #tpu.pipeline_mode<synchronous>, transform_indices = @transform_14, window_bounds = array<i64: 1, 128>}, {transform_indices = @transform_15, window_bounds = array<i64: 4, 64>}, {transform_indices = @transform_16, window_bounds = array<i64: 4, 128>}]} {
    %c0 = arith.constant 0 : index
    %c0_0 = arith.constant 0 : index
    %0 = vector.load %arg1[%c0, %c0_0] : memref<4x128xf32, #tpu.memory_space<vmem>>, vector<4x128xf32>
    %1 = arith.truncf %0 : vector<4x128xf32> to vector<4x128xbf16>
    %c0_1 = arith.constant 0 : index
    %c0_2 = arith.constant 0 : index
    %2 = vector.load %arg2[%c0_1, %c0_2] : memref<128x256xbf16, #tpu.memory_space<vmem>>, vector<128x256xbf16>
    %cst = arith.constant dense<0.000000e+00> : vector<4x256xf32>
    %3 = tpu.matmul %1, %2, %cst {dimension_numbers = #tpu.dot_dimension_numbers<[1], [0], [0], [1], [0, 0, 1, 1], [], []>} : vector<4x128xbf16>, vector<128x256xbf16>, vector<4x256xf32> -> vector<4x256xf32>
    %c0_3 = arith.constant 0 : index
    %c0_4 = arith.constant 0 : index
    %4 = vector.load %arg3[%c0_3, %c0_4] : memref<1x256xf32, #tpu.memory_space<vmem>>, vector<1x256xf32>
    %5 = vector.broadcast %4 : vector<1x256xf32> to vector<4x256xf32>
    %6 = arith.addf %3, %5 : vector<4x256xf32>
    %cst_5 = arith.constant 0.000000e+00 : f32
    %7 = vector.broadcast %cst_5 : f32 to vector<4x256xf32>
    %8 = arith.maximumf %6, %7 : vector<4x256xf32>
    %9 = arith.truncf %8 : vector<4x256xf32> to vector<4x256xbf16>
    %c0_6 = arith.constant 0 : index
    %c0_7 = arith.constant 0 : index
    %10 = vector.load %arg4[%c0_6, %c0_7] : memref<256x128xbf16, #tpu.memory_space<vmem>>, vector<256x128xbf16>
    %cst_8 = arith.constant dense<0.000000e+00> : vector<4x128xf32>
    %11 = tpu.matmul %9, %10, %cst_8 {dimension_numbers = #tpu.dot_dimension_numbers<[1], [0], [0], [1], [0, 0, 1, 1], [], []>} : vector<4x256xbf16>, vector<256x128xbf16>, vector<4x128xf32> -> vector<4x128xf32>
    %c0_9 = arith.constant 0 : index
    %c0_10 = arith.constant 0 : index
    %12 = vector.load %arg5[%c0_9, %c0_10] : memref<1x128xf32, #tpu.memory_space<vmem>>, vector<1x128xf32>
    %13 = vector.broadcast %12 : vector<1x128xf32> to vector<4x128xf32>
    %14 = arith.addf %11, %13 : vector<4x128xf32>
    %cst_11 = arith.constant 0.000000e+00 : f32
    %15 = vector.broadcast %cst_11 : f32 to vector<4x128xf32>
    %16 = arith.maximumf %14, %15 : vector<4x128xf32>
    %17 = arith.truncf %16 : vector<4x128xf32> to vector<4x128xbf16>
    %c0_12 = arith.constant 0 : index
    %c0_13 = arith.constant 0 : index
    %18 = vector.load %arg6[%c0_12, %c0_13] : memref<128x64xbf16, #tpu.memory_space<vmem>>, vector<128x64xbf16>
    %cst_14 = arith.constant dense<0.000000e+00> : vector<4x64xf32>
    %19 = tpu.matmul %17, %18, %cst_14 {dimension_numbers = #tpu.dot_dimension_numbers<[1], [0], [0], [1], [0, 0, 1, 1], [], []>} : vector<4x128xbf16>, vector<128x64xbf16>, vector<4x64xf32> -> vector<4x64xf32>
    %c0_15 = arith.constant 0 : index
    %c0_16 = arith.constant 0 : index
    %20 = vector.load %arg7[%c0_15, %c0_16] : memref<1x64xf32, #tpu.memory_space<vmem>>, vector<1x64xf32>
    %21 = vector.broadcast %20 : vector<1x64xf32> to vector<4x64xf32>
    %22 = arith.addf %19, %21 : vector<4x64xf32>
    %cst_17 = arith.constant 0.000000e+00 : f32
    %23 = vector.broadcast %cst_17 : f32 to vector<4x64xf32>
    %24 = arith.maximumf %22, %23 : vector<4x64xf32>
    %c0_18 = arith.constant 0 : index
    %c0_19 = arith.constant 0 : index
    %25 = vector.load %arg16[%c0_18, %c0_19] : memref<4x64xf32, #tpu.memory_space<vmem>>, vector<4x64xf32>
    tpu.vector_store %arg16[%c0_18, %c0_19], %24 {strides = array<i32>} : memref<4x64xf32, #tpu.memory_space<vmem>>, vector<4x64xf32>,
    %26 = arith.truncf %24 : vector<4x64xf32> to vector<4x64xbf16>
    %c0_20 = arith.constant 0 : index
    %c0_21 = arith.constant 0 : index
    %27 = vector.load %arg8[%c0_20, %c0_21] : memref<64x64xbf16, #tpu.memory_space<vmem>>, vector<64x64xbf16>
    %cst_22 = arith.constant dense<0.000000e+00> : vector<4x64xf32>
    %28 = tpu.matmul %26, %27, %cst_22 {dimension_numbers = #tpu.dot_dimension_numbers<[1], [0], [0], [1], [0, 0, 1, 1], [], []>} : vector<4x64xbf16>, vector<64x64xbf16>, vector<4x64xf32> -> vector<4x64xf32>
    %c0_23 = arith.constant 0 : index
    %c0_24 = arith.constant 0 : index
    %29 = vector.load %arg9[%c0_23, %c0_24] : memref<1x64xf32, #tpu.memory_space<vmem>>, vector<1x64xf32>
    %30 = vector.broadcast %29 : vector<1x64xf32> to vector<4x64xf32>
    %31 = arith.addf %28, %30 : vector<4x64xf32>
    %cst_25 = arith.constant 0.000000e+00 : f32
    %32 = vector.broadcast %cst_25 : f32 to vector<4x64xf32>
    %33 = arith.maximumf %31, %32 : vector<4x64xf32>
    %34 = arith.truncf %33 : vector<4x64xf32> to vector<4x64xbf16>
    %c0_26 = arith.constant 0 : index
    %c0_27 = arith.constant 0 : index
    %35 = vector.load %arg10[%c0_26, %c0_27] : memref<64x128xbf16, #tpu.memory_space<vmem>>, vector<64x128xbf16>
    %cst_28 = arith.constant dense<0.000000e+00> : vector<4x128xf32>
    %36 = tpu.matmul %34, %35, %cst_28 {dimension_numbers = #tpu.dot_dimension_numbers<[1], [0], [0], [1], [0, 0, 1, 1], [], []>} : vector<4x64xbf16>, vector<64x128xbf16>, vector<4x128xf32> -> vector<4x128xf32>
    %c0_29 = arith.constant 0 : index
    %c0_30 = arith.constant 0 : index
    %37 = vector.load %arg11[%c0_29, %c0_30] : memref<1x128xf32, #tpu.memory_space<vmem>>, vector<1x128xf32>
    %38 = vector.broadcast %37 : vector<1x128xf32> to vector<4x128xf32>
    %39 = arith.addf %36, %38 : vector<4x128xf32>
    %cst_31 = arith.constant 0.000000e+00 : f32
    %40 = vector.broadcast %cst_31 : f32 to vector<4x128xf32>
    %41 = arith.maximumf %39, %40 : vector<4x128xf32>
    %42 = arith.truncf %41 : vector<4x128xf32> to vector<4x128xbf16>
    %c0_32 = arith.constant 0 : index
    %c0_33 = arith.constant 0 : index
    %43 = vector.load %arg12[%c0_32, %c0_33] : memref<128x256xbf16, #tpu.memory_space<vmem>>, vector<128x256xbf16>
    %cst_34 = arith.constant dense<0.000000e+00> : vector<4x256xf32>
    %44 = tpu.matmul %42, %43, %cst_34 {dimension_numbers = #tpu.dot_dimension_numbers<[1], [0], [0], [1], [0, 0, 1, 1], [], []>} : vector<4x128xbf16>, vector<128x256xbf16>, vector<4x256xf32> -> vector<4x256xf32>
    %c0_35 = arith.constant 0 : index
    %c0_36 = arith.constant 0 : index
    %45 = vector.load %arg13[%c0_35, %c0_36] : memref<1x256xf32, #tpu.memory_space<vmem>>, vector<1x256xf32>
    %46 = vector.broadcast %45 : vector<1x256xf32> to vector<4x256xf32>
    %47 = arith.addf %44, %46 : vector<4x256xf32>
    %cst_37 = arith.constant 0.000000e+00 : f32
    %48 = vector.broadcast %cst_37 : f32 to vector<4x256xf32>
    %49 = arith.maximumf %47, %48 : vector<4x256xf32>
    %50 = arith.truncf %49 : vector<4x256xf32> to vector<4x256xbf16>
    %c0_38 = arith.constant 0 : index
    %c0_39 = arith.constant 0 : index
    %51 = vector.load %arg14[%c0_38, %c0_39] : memref<256x128xbf16, #tpu.memory_space<vmem>>, vector<256x128xbf16>
    %cst_40 = arith.constant dense<0.000000e+00> : vector<4x128xf32>
    %52 = tpu.matmul %50, %51, %cst_40 {dimension_numbers = #tpu.dot_dimension_numbers<[1], [0], [0], [1], [0, 0, 1, 1], [], []>} : vector<4x256xbf16>, vector<256x128xbf16>, vector<4x128xf32> -> vector<4x128xf32>
    %c0_41 = arith.constant 0 : index
    %c0_42 = arith.constant 0 : index
    %53 = vector.load %arg15[%c0_41, %c0_42] : memref<1x128xf32, #tpu.memory_space<vmem>>, vector<1x128xf32>
    %54 = vector.broadcast %53 : vector<1x128xf32> to vector<4x128xf32>
    %55 = arith.addf %52, %54 : vector<4x128xf32>
    %c0_43 = arith.constant 0 : index
    %c0_44 = arith.constant 0 : index
    %56 = vector.load %arg17[%c0_43, %c0_44] : memref<4x128xf32, #tpu.memory_space<vmem>>, vector<4x128xf32>
    tpu.vector_store %arg17[%c0_43, %c0_44], %55 {strides = array<i32>} : memref<4x128xf32, #tpu.memory_space<vmem>>, vector<4x128xf32>,
    return
  }
  func.func @transform_0(%arg0: i32) -> (i32, i32) {
    %c0_i32 = arith.constant 0 : i32
    %c0_i32_0 = arith.constant 0 : i32
    return %arg0, %c0_i32 : i32, i32
  }
  func.func @transform_1(%arg0: i32) -> (i32, i32) {
    %c0_i32 = arith.constant 0 : i32
    %c0_i32_0 = arith.constant 0 : i32
    %c0_i32_1 = arith.constant 0 : i32
    return %c0_i32, %c0_i32_0 : i32, i32
  }
  func.func @transform_2(%arg0: i32) -> (i32, i32) {
    %c0_i32 = arith.constant 0 : i32
    %c0_i32_0 = arith.constant 0 : i32
    %c0_i32_1 = arith.constant 0 : i32
    return %c0_i32, %c0_i32_0 : i32, i32
  }
  func.func @transform_3(%arg0: i32) -> (i32, i32) {
    %c0_i32 = arith.constant 0 : i32
    %c0_i32_0 = arith.constant 0 : i32
    %c0_i32_1 = arith.constant 0 : i32
    return %c0_i32, %c0_i32_0 : i32, i32
  }
  func.func @transform_4(%arg0: i32) -> (i32, i32) {
    %c0_i32 = arith.constant 0 : i32
    %c0_i32_0 = arith.constant 0 : i32
    %c0_i32_1 = arith.constant 0 : i32
    return %c0_i32, %c0_i32_0 : i32, i32
  }
  func.func @transform_5(%arg0: i32) -> (i32, i32) {
    %c0_i32 = arith.constant 0 : i32
    %c0_i32_0 = arith.constant 0 : i32
    %c0_i32_1 = arith.constant 0 : i32
    return %c0_i32, %c0_i32_0 : i32, i32
  }
  func.func @transform_6(%arg0: i32) -> (i32, i32) {
    %c0_i32 = arith.constant 0 : i32
    %c0_i32_0 = arith.constant 0 : i32
    %c0_i32_1 = arith.constant 0 : i32
    return %c0_i32, %c0_i32_0 : i32, i32
  }
  func.func @transform_7(%arg0: i32) -> (i32, i32) {
    %c0_i32 = arith.constant 0 : i32
    %c0_i32_0 = arith.constant 0 : i32
    %c0_i32_1 = arith.constant 0 : i32
    return %c0_i32, %c0_i32_0 : i32, i32
  }
  func.func @transform_8(%arg0: i32) -> (i32, i32) {
    %c0_i32 = arith.constant 0 : i32
    %c0_i32_0 = arith.constant 0 : i32
    %c0_i32_1 = arith.constant 0 : i32
    return %c0_i32, %c0_i32_0 : i32, i32
  }
  func.func @transform_9(%arg0: i32) -> (i32, i32) {
    %c0_i32 = arith.constant 0 : i32
    %c0_i32_0 = arith.constant 0 : i32
    %c0_i32_1 = arith.constant 0 : i32
    return %c0_i32, %c0_i32_0 : i32, i32
  }
  func.func @transform_10(%arg0: i32) -> (i32, i32) {
    %c0_i32 = arith.constant 0 : i32
    %c0_i32_0 = arith.constant 0 : i32
    %c0_i32_1 = arith.constant 0 : i32
    return %c0_i32, %c0_i32_0 : i32, i32
  }
  func.func @transform_11(%arg0: i32) -> (i32, i32) {
    %c0_i32 = arith.constant 0 : i32
    %c0_i32_0 = arith.constant 0 : i32
    %c0_i32_1 = arith.constant 0 : i32
    return %c0_i32, %c0_i32_0 : i32, i32
  }
  func.func @transform_12(%arg0: i32) -> (i32, i32) {
    %c0_i32 = arith.constant 0 : i32
    %c0_i32_0 = arith.constant 0 : i32
    %c0_i32_1 = arith.constant 0 : i32
    return %c0_i32, %c0_i32_0 : i32, i32
  }
  func.func @transform_13(%arg0: i32) -> (i32, i32) {
    %c0_i32 = arith.constant 0 : i32
    %c0_i32_0 = arith.constant 0 : i32
    %c0_i32_1 = arith.constant 0 : i32
    return %c0_i32, %c0_i32_0 : i32, i32
  }
  func.func @transform_14(%arg0: i32) -> (i32, i32) {
    %c0_i32 = arith.constant 0 : i32
    %c0_i32_0 = arith.constant 0 : i32
    %c0_i32_1 = arith.constant 0 : i32
    return %c0_i32, %c0_i32_0 : i32, i32
  }
  func.func @transform_15(%arg0: i32) -> (i32, i32) {
    %c0_i32 = arith.constant 0 : i32
    %c0_i32_0 = arith.constant 0 : i32
    return %arg0, %c0_i32 : i32, i32
  }
  func.func @transform_16(%arg0: i32) -> (i32, i32) {
    %c0_i32 = arith.constant 0 : i32
    %c0_i32_0 = arith.constant 0 : i32
    return %arg0, %c0_i32 : i32, i32
  }
}

</mosaic_0001>

<llo_original>
// kernel: tpu_custom_call.1
$region0: #{tpu_custom_call.1}
  #allocation0 [shape = 'u32[]', space=smem, size = 0x4, offset = 0x4, fixed_abs, tag = 'smem constant byte address 0x4 - core index']
  #allocation1 [shape = 'u32[144,128]{1,0:T(1,128)}', space=vmem, size = 0x12000, scoped, tag = 'internal scratch']
  %s0 = inlined_call_operand.vmem [shape: f32[4,128], index: 0, kind: input, shape index: {}]
  %s1 = inlined_call_operand.hbm [shape: bf16[128,256], index: 1, kind: input, shape index: {}]
  %s2 = inlined_call_operand.vmem [shape: f32[1,256], index: 2, kind: input, shape index: {}]
  %s3 = inlined_call_operand.hbm [shape: bf16[256,128], index: 3, kind: input, shape index: {}]
  %s4 = inlined_call_operand.vmem [shape: f32[1,128], index: 4, kind: input, shape index: {}]
  %s5 = inlined_call_operand.vmem [shape: bf16[128,64], index: 5, kind: input, shape index: {}]
  %s6 = inlined_call_operand.hbm [shape: f32[1,64], index: 6, kind: input, shape index: {}]
  %s7 = inlined_call_operand.hbm [shape: bf16[64,64], index: 7, kind: input, shape index: {}]
  %s8 = inlined_call_operand.hbm [shape: f32[1,64], index: 8, kind: input, shape index: {}]
  %s9 = inlined_call_operand.hbm [shape: bf16[64,128], index: 9, kind: input, shape index: {}]
  %s10 = inlined_call_operand.hbm [shape: f32[1,128], index: 10, kind: input, shape index: {}]
  %s11 = inlined_call_operand.vmem [shape: bf16[128,256], index: 11, kind: input, shape index: {}]
  %s12 = inlined_call_operand.vmem [shape: f32[1,256], index: 12, kind: input, shape index: {}]
  %s13 = inlined_call_operand.hbm [shape: bf16[256,128], index: 13, kind: input, shape index: {}]
  %s14 = inlined_call_operand.vmem [shape: f32[1,128], index: 14, kind: input, shape index: {}]
  %s15 = inlined_call_operand.hbm [shape: f32[4,64], index: 15, kind: output, shape index: {0}]
  %s16 = inlined_call_operand.hbm [shape: f32[4,128], index: 16, kind: output, shape index: {1}]
  %17 = xla_tuple %s15, %s16
  %s18 = sld [smem:[#allocation0]]
  $region110: #{tpu_custom_call.1} parent=0
    _
  %s20 = ssub.s32 1, %s18
  %s21 = scalar_select 0, %s20, %s18
  $region1: #{tpu_custom_call.1} parent=0
    #allocation2 [shape = 'u8[65536]{0}', space=vmem, size = 0x10000, scoped, tag = 'input window, operand 1, single buffered']
    #allocation3 [shape = 's32[1]{0}', space=sflag, size = 0x4, scoped, tag = 'scoped memory for tpu_custom_call.1']
    #allocation4 [shape = 's32[1]{0}', space=sflag, size = 0x4, scoped, tag = 'scoped memory for tpu_custom_call.1']
    #allocation5 [shape = 'u8[65536]{0}', space=vmem, size = 0x10000, scoped, tag = 'input window, operand 3, single buffered']
    #allocation6 [shape = 's32[1]{0}', space=sflag, size = 0x4, scoped, tag = 'scoped memory for tpu_custom_call.1']
    #allocation7 [shape = 'u8[512]{0}', space=vmem, size = 0x400, scoped, tag = 'input window, operand 6, single buffered']
    #allocation8 [shape = 'u8[16384]{0}', space=vmem, size = 0x4000, scoped, tag = 'input window, operand 7, single buffered']
    #allocation9 [shape = 's32[1]{0}', space=sflag, size = 0x4, scoped, tag = 'scoped memory for tpu_custom_call.1']
    #allocation10 [shape = 'u8[512]{0}', space=vmem, size = 0x400, scoped, tag = 'input window, operand 8, single buffered']
    #allocation11 [shape = 'u8[16384]{0}', space=vmem, size = 0x4000, scoped, tag = 'input window, operand 9, single buffered']
    #allocation12 [shape = 's32[1]{0}', space=sflag, size = 0x4, scoped, tag = 'scoped memory for tpu_custom_call.1']
    #allocation13 [shape = 'u8[512]{0}', space=vmem, size = 0x400, scoped, tag = 'input window, operand 10, single buffered']
    #allocation14 [shape = 'u8[65536]{0}', space=vmem, size = 0x10000, scoped, tag = 'input window, operand 13, single buffered']
    #allocation15 [shape = 's32[1]{0}', space=sflag, size = 0x4, scoped, tag = 'scoped memory for tpu_custom_call.1']
    #allocation16 [shape = 'u8[2048]{0}', space=vmem, size = 0x800, scoped, tag = 'output window, operand 0, single buffered']
    #allocation17 [shape = 'u8[2048]{0}', space=vmem, size = 0x800, scoped, tag = 'output window, operand 1, single buffered']
    #allocation18 [shape = 's32[1]{0}', space=sflag, size = 0x4, scoped, tag = 'scoped memory for tpu_custom_call.1']
    %22 = vsyncpa [#allocation3], 0
    %23 = vsyncpa [#allocation6], 0
    %24 = vsyncpa [#allocation9], 0
    %25 = vsyncpa [#allocation12], 0
    %26 = vsyncpa [#allocation15], 0
    %27 = vsyncpa [#allocation4], 0
    %28 = vsyncpa [#allocation18], 0
    // Predicated region
    $region2: #{tpu_custom_call.1} parent=1 // pred_check
      _
    $region3: #{tpu_custom_call.1} parent=1 // pred_check_branch
      %30 = sbr.rel (0) target = $region5
    $region4: #{tpu_custom_call.1} parent=1 // pred_region
      _
    $region5: #{tpu_custom_call.1} parent=1 // pred_fallthru
      _
    // Predicated region
    $region6: #{tpu_custom_call.1} parent=1 // pred_check
      _
    $region7: #{tpu_custom_call.1} parent=1 // pred_check_branch
      %32 = sbr.rel (0) target = $region9
    $region8: #{tpu_custom_call.1} parent=1 // pred_region
      %s34 = ssub.s32 2048, 2048
      %35 = vsyncadd [#allocation3], %s34
      %s36 = sshll.u32 [#allocation2], 4
      %s37 = int_to_ptr.vmem [resolvable:$true] %s36
      %42 = dma.hbm_to_vmem [thread:$0]  %s1, 2048, %s37, [#allocation3], 128, 128, 8
    $region9: #{tpu_custom_call.1} parent=1 // pred_fallthru
      _
    // Predicated region
    $region10: #{tpu_custom_call.1} parent=1 // pred_check
      _
    $region11: #{tpu_custom_call.1} parent=1 // pred_check_branch
      %44 = sbr.rel (0) target = $region13
    $region12: #{tpu_custom_call.1} parent=1 // pred_region
      _
    $region13: #{tpu_custom_call.1} parent=1 // pred_fallthru
      _
    // Predicated region
    $region14: #{tpu_custom_call.1} parent=1 // pred_check
      _
    $region15: #{tpu_custom_call.1} parent=1 // pred_check_branch
      %46 = sbr.rel (0) target = $region17
    $region16: #{tpu_custom_call.1} parent=1 // pred_region
      %s48 = ssub.s32 2048, 2048
      %49 = vsyncadd [#allocation6], %s48
      %s50 = sshll.u32 [#allocation5], 4
      %s51 = int_to_ptr.vmem [resolvable:$true] %s50
      %56 = dma.hbm_to_vmem [thread:$0]  %s3, 2048, %s51, [#allocation6], 64, 64, 4
    $region17: #{tpu_custom_call.1} parent=1 // pred_fallthru
      _
    // Predicated region
    $region18: #{tpu_custom_call.1} parent=1 // pred_check
      _
    $region19: #{tpu_custom_call.1} parent=1 // pred_check_branch
      %58 = sbr.rel (0) target = $region21
    $region20: #{tpu_custom_call.1} parent=1 // pred_region
      _
    $region21: #{tpu_custom_call.1} parent=1 // pred_fallthru
      _
    // Predicated region
    $region22: #{tpu_custom_call.1} parent=1 // pred_check
      _
    $region23: #{tpu_custom_call.1} parent=1 // pred_check_branch
      %60 = sbr.rel (0) target = $region25
    $region24: #{tpu_custom_call.1} parent=1 // pred_region
      _
    $region25: #{tpu_custom_call.1} parent=1 // pred_fallthru
      _
    // Predicated region
    $region26: #{tpu_custom_call.1} parent=1 // pred_check
      _
    $region27: #{tpu_custom_call.1} parent=1 // pred_check_branch
      %62 = sbr.rel (0) target = $region29
    $region28: #{tpu_custom_call.1} parent=1 // pred_region
      %s64 = ssub.s32 16, 16
      %65 = vsyncadd [#allocation6], %s64
      %s67 = sshll.u32 [#allocation7], 4
      %s68 = int_to_ptr.vmem [resolvable:$true] %s67
      %70 = dma.hbm_to_vmem [thread:$0]  %s6, 16, %s68, [#allocation6]
    $region29: #{tpu_custom_call.1} parent=1 // pred_fallthru
      _
    // Predicated region
    $region30: #{tpu_custom_call.1} parent=1 // pred_check
      _
    $region31: #{tpu_custom_call.1} parent=1 // pred_check_branch
      %72 = sbr.rel (0) target = $region33
    $region32: #{tpu_custom_call.1} parent=1 // pred_region
      %s74 = ssub.s32 512, 512
      %75 = vsyncadd [#allocation9], %s74
      %s76 = sshll.u32 [#allocation8], 4
      %s77 = int_to_ptr.vmem [resolvable:$true] %s76
      %82 = dma.hbm_to_vmem [thread:$0]  %s7, 512, %s77, [#allocation9], 64, 64, 4
    $region33: #{tpu_custom_call.1} parent=1 // pred_fallthru
      _
    // Predicated region
    $region34: #{tpu_custom_call.1} parent=1 // pred_check
      _
    $region35: #{tpu_custom_call.1} parent=1 // pred_check_branch
      %84 = sbr.rel (0) target = $region37
    $region36: #{tpu_custom_call.1} parent=1 // pred_region
      %s86 = ssub.s32 16, 16
      %87 = vsyncadd [#allocation9], %s86
      %s89 = sshll.u32 [#allocation10], 4
      %s90 = int_to_ptr.vmem [resolvable:$true] %s89
      %92 = dma.hbm_to_vmem [thread:$0]  %s8, 16, %s90, [#allocation9]
    $region37: #{tpu_custom_call.1} parent=1 // pred_fallthru
      _
    // Predicated region
    $region38: #{tpu_custom_call.1} parent=1 // pred_check
      _
    $region39: #{tpu_custom_call.1} parent=1 // pred_check_branch
      %94 = sbr.rel (0) target = $region41
    $region40: #{tpu_custom_call.1} parent=1 // pred_region
      %s96 = ssub.s32 512, 512
      %97 = vsyncadd [#allocation12], %s96
      %s98 = sshll.u32 [#allocation11], 4
      %s99 = int_to_ptr.vmem [resolvable:$true] %s98
      %104 = dma.hbm_to_vmem [thread:$0]  %s9, 512, %s99, [#allocation12], 64, 64, 4
    $region41: #{tpu_custom_call.1} parent=1 // pred_fallthru
      _
    // Predicated region
    $region42: #{tpu_custom_call.1} parent=1 // pred_check
      _
    $region43: #{tpu_custom_call.1} parent=1 // pred_check_branch
      %106 = sbr.rel (0) target = $region45
    $region44: #{tpu_custom_call.1} parent=1 // pred_region
      %s108 = ssub.s32 16, 16
      %109 = vsyncadd [#allocation12], %s108
      %s111 = sshll.u32 [#allocation13], 4
      %s112 = int_to_ptr.vmem [resolvable:$true] %s111
      %114 = dma.hbm_to_vmem [thread:$0]  %s10, 16, %s112, [#allocation12]
    $region45: #{tpu_custom_call.1} parent=1 // pred_fallthru
      _
    // Predicated region
    $region46: #{tpu_custom_call.1} parent=1 // pred_check
      _
    $region47: #{tpu_custom_call.1} parent=1 // pred_check_branch
      %116 = sbr.rel (0) target = $region49
    $region48: #{tpu_custom_call.1} parent=1 // pred_region
      _
    $region49: #{tpu_custom_call.1} parent=1 // pred_fallthru
      _
    // Predicated region
    $region50: #{tpu_custom_call.1} parent=1 // pred_check
      _
    $region51: #{tpu_custom_call.1} parent=1 // pred_check_branch
      %118 = sbr.rel (0) target = $region53
    $region52: #{tpu_custom_call.1} parent=1 // pred_region
      _
    $region53: #{tpu_custom_call.1} parent=1 // pred_fallthru
      _
    // Predicated region
    $region54: #{tpu_custom_call.1} parent=1 // pred_check
      _
    $region55: #{tpu_custom_call.1} parent=1 // pred_check_branch
      %120 = sbr.rel (0) target = $region57
    $region56: #{tpu_custom_call.1} parent=1 // pred_region
      %s122 = ssub.s32 2048, 2048
      %123 = vsyncadd [#allocation15], %s122
      %s124 = sshll.u32 [#allocation14], 4
      %s125 = int_to_ptr.vmem [resolvable:$true] %s124
      %130 = dma.hbm_to_vmem [thread:$0]  %s13, 2048, %s125, [#allocation15], 64, 64, 4
    $region57: #{tpu_custom_call.1} parent=1 // pred_fallthru
      _
    // Predicated region
    $region58: #{tpu_custom_call.1} parent=1 // pred_check
      _
    $region59: #{tpu_custom_call.1} parent=1 // pred_check_branch
      %132 = sbr.rel (0) target = $region61
    $region60: #{tpu_custom_call.1} parent=1 // pred_region
      _
    $region61: #{tpu_custom_call.1} parent=1 // pred_fallthru
      _
    // Predicated region
    $region62: #{tpu_custom_call.1} parent=1 // pred_check
      _
    $region63: #{tpu_custom_call.1} parent=1 // pred_check_branch
      %134 = sbr.rel (0) target = $region65
    $region64: #{tpu_custom_call.1} parent=1 // pred_region
      %135 = dma.done [#allocation3], 2048
    $region65: #{tpu_custom_call.1} parent=1 // pred_fallthru
      _
    // Predicated region
    $region66: #{tpu_custom_call.1} parent=1 // pred_check
      _
    $region67: #{tpu_custom_call.1} parent=1 // pred_check_branch
      %137 = sbr.rel (0) target = $region69
    $region68: #{tpu_custom_call.1} parent=1 // pred_region
      %138 = dma.done [#allocation6], 2048
    $region69: #{tpu_custom_call.1} parent=1 // pred_fallthru
      _
    // Predicated region
    $region70: #{tpu_custom_call.1} parent=1 // pred_check
      _
    $region71: #{tpu_custom_call.1} parent=1 // pred_check_branch
      %140 = sbr.rel (0) target = $region73
    $region72: #{tpu_custom_call.1} parent=1 // pred_region
      %141 = dma.done [#allocation6], 16
    $region73: #{tpu_custom_call.1} parent=1 // pred_fallthru
      _
    // Predicated region
    $region74: #{tpu_custom_call.1} parent=1 // pred_check
      _
    $region75: #{tpu_custom_call.1} parent=1 // pred_check_branch
      %143 = sbr.rel (0) target = $region77
    $region76: #{tpu_custom_call.1} parent=1 // pred_region
      %144 = dma.done [#allocation9], 512
    $region77: #{tpu_custom_call.1} parent=1 // pred_fallthru
      _
    // Predicated region
    $region78: #{tpu_custom_call.1} parent=1 // pred_check
      _
    $region79: #{tpu_custom_call.1} parent=1 // pred_check_branch
      %146 = sbr.rel (0) target = $region81
    $region80: #{tpu_custom_call.1} parent=1 // pred_region
      %147 = dma.done [#allocation9], 16
    $region81: #{tpu_custom_call.1} parent=1 // pred_fallthru
      _
    // Predicated region
    $region82: #{tpu_custom_call.1} parent=1 // pred_check
      _
    $region83: #{tpu_custom_call.1} parent=1 // pred_check_branch
      %149 = sbr.rel (0) target = $region85
    $region84: #{tpu_custom_call.1} parent=1 // pred_region
      %150 = dma.done [#allocation12], 512
    $region85: #{tpu_custom_call.1} parent=1 // pred_fallthru
      _
    // Predicated region
    $region86: #{tpu_custom_call.1} parent=1 // pred_check
      _
    $region87: #{tpu_custom_call.1} parent=1 // pred_check_branch
      %152 = sbr.rel (0) target = $region89
    $region88: #{tpu_custom_call.1} parent=1 // pred_region
      %153 = dma.done [#allocation12], 16
    $region89: #{tpu_custom_call.1} parent=1 // pred_fallthru
      _
    // Predicated region
    $region90: #{tpu_custom_call.1} parent=1 // pred_check
      _
    $region91: #{tpu_custom_call.1} parent=1 // pred_check_branch
      %155 = sbr.rel (0) target = $region93
    $region92: #{tpu_custom_call.1} parent=1 // pred_region
      %156 = dma.done [#allocation15], 2048
    $region93: #{tpu_custom_call.1} parent=1 // pred_fallthru
      _
    %v158 = vld [vmem:[%s0] sm:$0xf]
    %v159 = vpack.c.bf16 %v158, %v158
    %v160 = vld [vmem:[#allocation2] sm:$0xff]
    %v161 = vld [vmem:[#allocation2 + $0x8] sm:$0xff]
    %v162 = vld [vmem:[#allocation2 + $0x10] sm:$0xff]
    %v163 = vld [vmem:[#allocation2 + $0x18] sm:$0xff]
    %v164 = vld [vmem:[#allocation2 + $0x20] sm:$0xff]
    %v165 = vld [vmem:[#allocation2 + $0x28] sm:$0xff]
    %v166 = vld [vmem:[#allocation2 + $0x30] sm:$0xff]
    %v167 = vld [vmem:[#allocation2 + $0x38] sm:$0xff]
    %v168 = vld [vmem:[#allocation2 + $0x40] sm:$0xff]
    %v169 = vld [vmem:[#allocation2 + $0x48] sm:$0xff]
    %v170 = vld [vmem:[#allocation2 + $0x50] sm:$0xff]
    %v171 = vld [vmem:[#allocation2 + $0x58] sm:$0xff]
    %v172 = vld [vmem:[#allocation2 + $0x60] sm:$0xff]
    %v173 = vld [vmem:[#allocation2 + $0x68] sm:$0xff]
    %v174 = vld [vmem:[#allocation2 + $0x70] sm:$0xff]
    %v175 = vld [vmem:[#allocation2 + $0x78] sm:$0xff]
    %v176 = vld [vmem:[%s2] sm:$0x3]
    %v178 = vlaneseq
    %v179 = vshrl.u32 %v178, 7
    %v180 = vsub.s32 0, %v179
    %v181 = vrot.slane %v176, %v180
    %v182 = vlaneseq
    %v183 = vshrl.u32 %v182, 7
    %v184 = vsub.s32 1, %v183
    %v185 = vrot.slane %v176, %v184
    %v204 = vunpack.c.l.b16 %v160
    %v205 = vunpack.c.h.b16 %v160
    %v206 = vunpack.c.l.b16 %v161
    %v207 = vunpack.c.h.b16 %v161
    %v208 = vunpack.c.l.b16 %v162
    %v209 = vunpack.c.h.b16 %v162
    %v210 = vunpack.c.l.b16 %v163
    %v211 = vunpack.c.h.b16 %v163
    %v212 = vunpack.c.l.b16 %v164
    %v213 = vunpack.c.h.b16 %v164
    %v214 = vunpack.c.l.b16 %v165
    %v215 = vunpack.c.h.b16 %v165
    %v216 = vunpack.c.l.b16 %v166
    %v217 = vunpack.c.h.b16 %v166
    %v218 = vunpack.c.l.b16 %v167
    %v219 = vunpack.c.h.b16 %v167
    %v220 = vunpack.c.l.b16 %v168
    %v221 = vunpack.c.h.b16 %v168
    %v222 = vunpack.c.l.b16 %v169
    %v223 = vunpack.c.h.b16 %v169
    %v224 = vunpack.c.l.b16 %v170
    %v225 = vunpack.c.h.b16 %v170
    %v226 = vunpack.c.l.b16 %v171
    %v227 = vunpack.c.h.b16 %v171
    %v228 = vunpack.c.l.b16 %v172
    %v229 = vunpack.c.h.b16 %v172
    %v230 = vunpack.c.l.b16 %v173
    %v231 = vunpack.c.h.b16 %v173
    %v232 = vunpack.c.l.b16 %v174
    %v233 = vunpack.c.h.b16 %v174
    %v234 = vunpack.c.l.b16 %v175
    %v235 = vunpack.c.h.b16 %v175
    %v236 = vpack.c.b16 %v206, %v204
    %v237 = vpack.c.b16 %v207, %v205
    %v238 = vpack.c.b16 %v210, %v208
    %v239 = vpack.c.b16 %v211, %v209
    %v240 = vpack.c.b16 %v214, %v212
    %v241 = vpack.c.b16 %v215, %v213
    %v242 = vpack.c.b16 %v218, %v216
    %v243 = vpack.c.b16 %v219, %v217
    %v244 = vpack.c.b16 %v222, %v220
    %v245 = vpack.c.b16 %v223, %v221
    %v246 = vpack.c.b16 %v226, %v224
    %v247 = vpack.c.b16 %v227, %v225
    %v248 = vpack.c.b16 %v230, %v228
    %v249 = vpack.c.b16 %v231, %v229
    %v250 = vpack.c.b16 %v234, %v232
    %v251 = vpack.c.b16 %v235, %v233
    %268 = vmatprep.subr.bf16.mxu0 %v237
    %269 = vmatpush1.bf16.msra.mxu0 %v236
    %270 = vmatprep.subr.bf16.mxu0 %v239
    %271 = vmatpush1.bf16.msra.mxu0 %v238
    %272 = vmatprep.subr.bf16.mxu0 %v241
    %273 = vmatpush1.bf16.msra.mxu0 %v240
    %274 = vmatprep.subr.bf16.mxu0 %v243
    %275 = vmatpush1.bf16.msra.mxu0 %v242
    %276 = vmatprep.subr.bf16.mxu0 %v245
    %277 = vmatpush1.bf16.msra.mxu0 %v244
    %278 = vmatprep.subr.bf16.mxu0 %v247
    %279 = vmatpush1.bf16.msra.mxu0 %v246
    %280 = vmatprep.subr.bf16.mxu0 %v249
    %281 = vmatpush1.bf16.msra.mxu0 %v248
    %282 = vmatprep.subr.bf16.mxu0 %v251
    %283 = vmatpush1.bf16.msra.mxu0 %v250
    %284 = vmatprep.subr.bf16.mxu0 0
    %285 = vmatpush1.bf16.msra.mxu0 0
    %286 = vmatprep.subr.bf16.mxu0 0
    %287 = vmatpush1.bf16.msra.mxu0 0
    %288 = vmatprep.subr.bf16.mxu0 0
    %289 = vmatpush1.bf16.msra.mxu0 0
    %290 = vmatprep.subr.bf16.mxu0 0
    %291 = vmatpush1.bf16.msra.mxu0 0
    %292 = vmatprep.subr.bf16.mxu0 0
    %293 = vmatpush1.bf16.msra.mxu0 0
    %294 = vmatprep.subr.bf16.mxu0 0
    %295 = vmatpush1.bf16.msra.mxu0 0
    %296 = vmatprep.subr.bf16.mxu0 0
    %297 = vmatpush1.bf16.msra.mxu0 0
    %298 = vmatprep.subr.bf16.mxu0 0
    %299 = vmatpush1.bf16.msra.mxu0 0
    %300 = vmatprep.mubr.bf16.mxu0 0
    %301 = vmatmul.mubr.bf16.gmra.mrb[0].mxu0 %v159
    %v302 = vpop.f32.mrb[0].mxu0
    %v303 = vadd.f32 %v181, %v302
    %v304 = vpop.f32.mrb[0].mxu0
    %v305 = vadd.f32 %v185, %v304
    %v306 = vpop.f32.mrb[0].mxu0
    %v307 = vpop.f32.mrb[0].mxu0
    %308 = vdwg.mxu0
    %v309 = vmax.f32 %v303, 0.0
    %v310 = vmax.f32 %v305, 0.0
    %v311 = vpack.c.bf16 %v309, %v309
    %v312 = vpack.c.bf16 %v310, %v310
    %v313 = vld [vmem:[#allocation5] sm:$0xf]
    %v314 = vld [vmem:[#allocation5 + $0x4] sm:$0xf]
    %v315 = vld [vmem:[#allocation5 + $0x8] sm:$0xf]
    %v316 = vld [vmem:[#allocation5 + $0xc] sm:$0xf]
    %v317 = vld [vmem:[#allocation5 + $0x10] sm:$0xf]
    %v318 = vld [vmem:[#allocation5 + $0x14] sm:$0xf]
    %v319 = vld [vmem:[#allocation5 + $0x18] sm:$0xf]
    %v320 = vld [vmem:[#allocation5 + $0x1c] sm:$0xf]
    %v321 = vld [vmem:[#allocation5 + $0x20] sm:$0xf]
    %v322 = vld [vmem:[#allocation5 + $0x24] sm:$0xf]
    %v323 = vld [vmem:[#allocation5 + $0x28] sm:$0xf]
    %v324 = vld [vmem:[#allocation5 + $0x2c] sm:$0xf]
    %v325 = vld [vmem:[#allocation5 + $0x30] sm:$0xf]
    %v326 = vld [vmem:[#allocation5 + $0x34] sm:$0xf]
    %v327 = vld [vmem:[#allocation5 + $0x38] sm:$0xf]
    %v328 = vld [vmem:[#allocation5 + $0x3c] sm:$0xf]
    %v329 = vld [vmem:[#allocation5 + $0x40] sm:$0xf]
    %v330 = vld [vmem:[#allocation5 + $0x44] sm:$0xf]
    %v331 = vld [vmem:[#allocation5 + $0x48] sm:$0xf]
    %v332 = vld [vmem:[#allocation5 + $0x4c] sm:$0xf]
    %v333 = vld [vmem:[#allocation5 + $0x50] sm:$0xf]
    %v334 = vld [vmem:[#allocation5 + $0x54] sm:$0xf]
    %v335 = vld [vmem:[#allocation5 + $0x58] sm:$0xf]
    %v336 = vld [vmem:[#allocation5 + $0x5c] sm:$0xf]
    %v337 = vld [vmem:[#allocation5 + $0x60] sm:$0xf]
    %v338 = vld [vmem:[#allocation5 + $0x64] sm:$0xf]
    %v339 = vld [vmem:[#allocation5 + $0x68] sm:$0xf]
    %v340 = vld [vmem:[#allocation5 + $0x6c] sm:$0xf]
    %v341 = vld [vmem:[#allocation5 + $0x70] sm:$0xf]
    %v342 = vld [vmem:[#allocation5 + $0x74] sm:$0xf]
    %v343 = vld [vmem:[#allocation5 + $0x78] sm:$0xf]
    %v344 = vld [vmem:[#allocation5 + $0x7c] sm:$0xf]
    %v345 = vld [vmem:[%s4] sm:$0x1]
    %v347 = vlaneseq
    %v348 = vshrl.u32 %v347, 7
    %v349 = vsub.s32 0, %v348
    %v350 = vrot.slane %v345, %v349
    %v384 = vunpack.c.l.b16 %v313
    %v385 = vunpack.c.l.b16 %v314
    %v386 = vunpack.c.l.b16 %v315
    %v387 = vunpack.c.l.b16 %v316
    %v388 = vunpack.c.l.b16 %v317
    %v389 = vunpack.c.l.b16 %v318
    %v390 = vunpack.c.l.b16 %v319
    %v391 = vunpack.c.l.b16 %v320
    %v392 = vunpack.c.l.b16 %v321
    %v393 = vunpack.c.l.b16 %v322
    %v394 = vunpack.c.l.b16 %v323
    %v395 = vunpack.c.l.b16 %v324
    %v396 = vunpack.c.l.b16 %v325
    %v397 = vunpack.c.l.b16 %v326
    %v398 = vunpack.c.l.b16 %v327
    %v399 = vunpack.c.l.b16 %v328
    %v400 = vunpack.c.l.b16 %v329
    %v401 = vunpack.c.l.b16 %v330
    %v402 = vunpack.c.l.b16 %v331
    %v403 = vunpack.c.l.b16 %v332
    %v404 = vunpack.c.l.b16 %v333
    %v405 = vunpack.c.l.b16 %v334
    %v406 = vunpack.c.l.b16 %v335
    %v407 = vunpack.c.l.b16 %v336
    %v408 = vunpack.c.l.b16 %v337
    %v409 = vunpack.c.l.b16 %v338
    %v410 = vunpack.c.l.b16 %v339
    %v411 = vunpack.c.l.b16 %v340
    %v412 = vunpack.c.l.b16 %v341
    %v413 = vunpack.c.l.b16 %v342
    %v414 = vunpack.c.l.b16 %v343
    %v415 = vunpack.c.l.b16 %v344
    %v416 = vpack.c.b16 %v385, %v384
    %v417 = vpack.c.b16 %v387, %v386
    %v418 = vpack.c.b16 %v389, %v388
    %v419 = vpack.c.b16 %v391, %v390
    %v420 = vpack.c.b16 %v393, %v392
    %v421 = vpack.c.b16 %v395, %v394
    %v422 = vpack.c.b16 %v397, %v396
    %v423 = vpack.c.b16 %v399, %v398
    %v424 = vpack.c.b16 %v401, %v400
    %v425 = vpack.c.b16 %v403, %v402
    %v426 = vpack.c.b16 %v405, %v404
    %v427 = vpack.c.b16 %v407, %v406
    %v428 = vpack.c.b16 %v409, %v408
    %v429 = vpack.c.b16 %v411, %v410
    %v430 = vpack.c.b16 %v413, %v412
    %v431 = vpack.c.b16 %v415, %v414
    %448 = vmatprep.subr.bf16.mxu0 0
    %449 = vmatpush1.bf16.msra.mxu0 %v416
    %450 = vmatprep.subr.bf16.mxu0 0
    %451 = vmatpush1.bf16.msra.mxu0 %v417
    %452 = vmatprep.subr.bf16.mxu0 0
    %453 = vmatpush1.bf16.msra.mxu0 %v418
    %454 = vmatprep.subr.bf16.mxu0 0
    %455 = vmatpush1.bf16.msra.mxu0 %v419
    %456 = vmatprep.subr.bf16.mxu0 0
    %457 = vmatpush1.bf16.msra.mxu0 %v420
    %458 = vmatprep.subr.bf16.mxu0 0
    %459 = vmatpush1.bf16.msra.mxu0 %v421
    %460 = vmatprep.subr.bf16.mxu0 0
    %461 = vmatpush1.bf16.msra.mxu0 %v422
    %462 = vmatprep.subr.bf16.mxu0 0
    %463 = vmatpush1.bf16.msra.mxu0 %v423
    %464 = vmatprep.subr.bf16.mxu0 0
    %465 = vmatpush1.bf16.msra.mxu0 %v424
    %466 = vmatprep.subr.bf16.mxu0 0
    %467 = vmatpush1.bf16.msra.mxu0 %v425
    %468 = vmatprep.subr.bf16.mxu0 0
    %469 = vmatpush1.bf16.msra.mxu0 %v426
    %470 = vmatprep.subr.bf16.mxu0 0
    %471 = vmatpush1.bf16.msra.mxu0 %v427
    %472 = vmatprep.subr.bf16.mxu0 0
    %473 = vmatpush1.bf16.msra.mxu0 %v428
    %474 = vmatprep.subr.bf16.mxu0 0
    %475 = vmatpush1.bf16.msra.mxu0 %v429
    %476 = vmatprep.subr.bf16.mxu0 0
    %477 = vmatpush1.bf16.msra.mxu0 %v430
    %478 = vmatprep.subr.bf16.mxu0 0
    %479 = vmatpush1.bf16.msra.mxu0 %v431
    %480 = vmatprep.mubr.bf16.mxu0 %v312
    %481 = vmatmul.mubr.bf16.gmra.mrb[0].mxu0 %v311
    %v482 = vpop.f32.mrb[0].mxu0
    %v483 = vadd.f32 %v350, %v482
    %v484 = vpop.f32.mrb[0].mxu0
    %v485 = vpop.f32.mrb[0].mxu0
    %v486 = vpop.f32.mrb[0].mxu0
    %487 = vdwg.mxu0
    %v488 = vmax.f32 %v483, 0.0
    %v489 = vpack.c.bf16 %v488, %v488
    %v490 = vld [vmem:[%s5] sm:$0xf]
    %v491 = vld [vmem:[%s5 + $0x4] sm:$0xf]
    %v492 = vld [vmem:[%s5 + $0x8] sm:$0xf]
    %v493 = vld [vmem:[%s5 + $0xc] sm:$0xf]
    %v494 = vld [vmem:[%s5 + $0x10] sm:$0xf]
    %v495 = vld [vmem:[%s5 + $0x14] sm:$0xf]
    %v496 = vld [vmem:[%s5 + $0x18] sm:$0xf]
    %v497 = vld [vmem:[%s5 + $0x1c] sm:$0xf]
    %v498 = vld [vmem:[%s5 + $0x20] sm:$0xf]
    %v499 = vld [vmem:[%s5 + $0x24] sm:$0xf]
    %v500 = vld [vmem:[%s5 + $0x28] sm:$0xf]
    %v501 = vld [vmem:[%s5 + $0x2c] sm:$0xf]
    %v502 = vld [vmem:[%s5 + $0x30] sm:$0xf]
    %v503 = vld [vmem:[%s5 + $0x34] sm:$0xf]
    %v504 = vld [vmem:[%s5 + $0x38] sm:$0xf]
    %v505 = vld [vmem:[%s5 + $0x3c] sm:$0xf]
    %v506 = vld [vmem:[#allocation7] sm:$0x1]
    %v508 = vlaneseq
    %v509 = vshrl.u32 %v508, 7
    %v510 = vsub.s32 0, %v509
    %v511 = vrot.slane %v506, %v510
    %v529 = vunpack.c.l.b16 %v490
    %v530 = vunpack.c.l.b16 %v491
    %v531 = vunpack.c.l.b16 %v492
    %v532 = vunpack.c.l.b16 %v493
    %v533 = vunpack.c.l.b16 %v494
    %v534 = vunpack.c.l.b16 %v495
    %v535 = vunpack.c.l.b16 %v496
    %v536 = vunpack.c.l.b16 %v497
    %v537 = vunpack.c.l.b16 %v498
    %v538 = vunpack.c.l.b16 %v499
    %v539 = vunpack.c.l.b16 %v500
    %v540 = vunpack.c.l.b16 %v501
    %v541 = vunpack.c.l.b16 %v502
    %v542 = vunpack.c.l.b16 %v503
    %v543 = vunpack.c.l.b16 %v504
    %v544 = vunpack.c.l.b16 %v505
    %v545 = vpack.c.b16 %v530, %v529
    %v546 = vpack.c.b16 %v532, %v531
    %v547 = vpack.c.b16 %v534, %v533
    %v548 = vpack.c.b16 %v536, %v535
    %v549 = vpack.c.b16 %v538, %v537
    %v550 = vpack.c.b16 %v540, %v539
    %v551 = vpack.c.b16 %v542, %v541
    %v552 = vpack.c.b16 %v544, %v543
    %561 = vmatprep.subr.bf16.mxu0 0
    %562 = vmatpush1.bf16.msra.mxu0 %v545
    %563 = vmatprep.subr.bf16.mxu0 0
    %564 = vmatpush1.bf16.msra.mxu0 %v546
    %565 = vmatprep.subr.bf16.mxu0 0
    %566 = vmatpush1.bf16.msra.mxu0 %v547
    %567 = vmatprep.subr.bf16.mxu0 0
    %568 = vmatpush1.bf16.msra.mxu0 %v548
    %569 = vmatprep.subr.bf16.mxu0 0
    %570 = vmatpush1.bf16.msra.mxu0 %v549
    %571 = vmatprep.subr.bf16.mxu0 0
    %572 = vmatpush1.bf16.msra.mxu0 %v550
    %573 = vmatprep.subr.bf16.mxu0 0
    %574 = vmatpush1.bf16.msra.mxu0 %v551
    %575 = vmatprep.subr.bf16.mxu0 0
    %576 = vmatpush1.bf16.msra.mxu0 %v552
    %577 = vmatprep.subr.bf16.mxu0 0
    %578 = vmatpush1.bf16.msra.mxu0 0
    %579 = vmatprep.subr.bf16.mxu0 0
    %580 = vmatpush1.bf16.msra.mxu0 0
    %581 = vmatprep.subr.bf16.mxu0 0
    %582 = vmatpush1.bf16.msra.mxu0 0
    %583 = vmatprep.subr.bf16.mxu0 0
    %584 = vmatpush1.bf16.msra.mxu0 0
    %585 = vmatprep.subr.bf16.mxu0 0
    %586 = vmatpush1.bf16.msra.mxu0 0
    %587 = vmatprep.subr.bf16.mxu0 0
    %588 = vmatpush1.bf16.msra.mxu0 0
    %589 = vmatprep.subr.bf16.mxu0 0
    %590 = vmatpush1.bf16.msra.mxu0 0
    %591 = vmatprep.subr.bf16.mxu0 0
    %592 = vmatpush1.bf16.msra.mxu0 0
    %593 = vmatprep.mubr.bf16.mxu0 0
    %594 = vmatmul.mubr.bf16.gmra.mrb[0].mxu0 %v489
    %v595 = vpop.f32.mrb[0].mxu0
    %v596 = vadd.f32 %v511, %v595
    %v597 = vpop.f32.mrb[0].mxu0
    %v598 = vpop.f32.mrb[0].mxu0
    %v599 = vpop.f32.mrb[0].mxu0
    %600 = vdwg.mxu0
    %v601 = vmax.f32 %v596, 0.0
    %vm602 = vcmask 519168
    %603 = vst.msk [vmem:[#allocation16] sm:$0xf] %vm602, %v601
    %v604 = vpack.c.bf16 %v601, %v601
    %v605 = vld [vmem:[#allocation8] sm:$0xf]
    %v606 = vld [vmem:[#allocation8 + $0x4] sm:$0xf]
    %v607 = vld [vmem:[#allocation8 + $0x8] sm:$0xf]
    %v608 = vld [vmem:[#allocation8 + $0xc] sm:$0xf]
    %v609 = vld [vmem:[#allocation8 + $0x10] sm:$0xf]
    %v610 = vld [vmem:[#allocation8 + $0x14] sm:$0xf]
    %v611 = vld [vmem:[#allocation8 + $0x18] sm:$0xf]
    %v612 = vld [vmem:[#allocation8 + $0x1c] sm:$0xf]
    %v613 = vld [vmem:[#allocation10] sm:$0x1]
    %v615 = vlaneseq
    %v616 = vshrl.u32 %v615, 7
    %v617 = vsub.s32 0, %v616
    %v618 = vrot.slane %v613, %v617
    %v628 = vunpack.c.l.b16 %v605
    %v629 = vunpack.c.l.b16 %v606
    %v630 = vunpack.c.l.b16 %v607
    %v631 = vunpack.c.l.b16 %v608
    %v632 = vunpack.c.l.b16 %v609
    %v633 = vunpack.c.l.b16 %v610
    %v634 = vunpack.c.l.b16 %v611
    %v635 = vunpack.c.l.b16 %v612
    %v636 = vpack.c.b16 %v629, %v628
    %v637 = vpack.c.b16 %v631, %v630
    %v638 = vpack.c.b16 %v633, %v632
    %v639 = vpack.c.b16 %v635, %v634
    %vm644 = vcmask 523264
    %v646 = vsel %vm644, %v604, 0
    %648 = vmatprep.subr.bf16.mxu0 0
    %649 = vmatpush1.bf16.msra.mxu0 %v636
    %650 = vmatprep.subr.bf16.mxu0 0
    %651 = vmatpush1.bf16.msra.mxu0 %v637
    %652 = vmatprep.subr.bf16.mxu0 0
    %653 = vmatpush1.bf16.msra.mxu0 %v638
    %654 = vmatprep.subr.bf16.mxu0 0
    %655 = vmatpush1.bf16.msra.mxu0 %v639
    %656 = vmatprep.subr.bf16.mxu0 0
    %657 = vmatpush1.bf16.msra.mxu0 0
    %658 = vmatprep.subr.bf16.mxu0 0
    %659 = vmatpush1.bf16.msra.mxu0 0
    %660 = vmatprep.subr.bf16.mxu0 0
    %661 = vmatpush1.bf16.msra.mxu0 0
    %662 = vmatprep.subr.bf16.mxu0 0
    %663 = vmatpush1.bf16.msra.mxu0 0
    %664 = vmatprep.subr.bf16.mxu0 0
    %665 = vmatpush1.bf16.msra.mxu0 0
    %666 = vmatprep.subr.bf16.mxu0 0
    %667 = vmatpush1.bf16.msra.mxu0 0
    %668 = vmatprep.subr.bf16.mxu0 0
    %669 = vmatpush1.bf16.msra.mxu0 0
    %670 = vmatprep.subr.bf16.mxu0 0
    %671 = vmatpush1.bf16.msra.mxu0 0
    %672 = vmatprep.subr.bf16.mxu0 0
    %673 = vmatpush1.bf16.msra.mxu0 0
    %674 = vmatprep.subr.bf16.mxu0 0
    %675 = vmatpush1.bf16.msra.mxu0 0
    %676 = vmatprep.subr.bf16.mxu0 0
    %677 = vmatpush1.bf16.msra.mxu0 0
    %678 = vmatprep.subr.bf16.mxu0 0
    %679 = vmatpush1.bf16.msra.mxu0 0
    %680 = vmatprep.mubr.bf16.mxu0 0
    %681 = vmatmul.mubr.bf16.gmra.mrb[0].mxu0 %v646
    %v682 = vpop.f32.mrb[0].mxu0
    %v683 = vadd.f32 %v618, %v682
    %v684 = vpop.f32.mrb[0].mxu0
    %v685 = vpop.f32.mrb[0].mxu0
    %v686 = vpop.f32.mrb[0].mxu0
    %687 = vdwg.mxu0
    %v688 = vmax.f32 %v683, 0.0
    %v689 = vpack.c.bf16 %v688, %v688
    %v690 = vld [vmem:[#allocation11] sm:$0xf]
    %v691 = vld [vmem:[#allocation11 + $0x4] sm:$0xf]
    %v692 = vld [vmem:[#allocation11 + $0x8] sm:$0xf]
    %v693 = vld [vmem:[#allocation11 + $0xc] sm:$0xf]
    %v694 = vld [vmem:[#allocation11 + $0x10] sm:$0xf]
    %v695 = vld [vmem:[#allocation11 + $0x14] sm:$0xf]
    %v696 = vld [vmem:[#allocation11 + $0x18] sm:$0xf]
    %v697 = vld [vmem:[#allocation11 + $0x1c] sm:$0xf]
    %v698 = vld [vmem:[#allocation13] sm:$0x1]
    %v700 = vlaneseq
    %v701 = vshrl.u32 %v700, 7
    %v702 = vsub.s32 0, %v701
    %v703 = vrot.slane %v698, %v702
    %v713 = vunpack.c.l.b16 %v690
    %v714 = vunpack.c.l.b16 %v691
    %v715 = vunpack.c.l.b16 %v692
    %v716 = vunpack.c.l.b16 %v693
    %v717 = vunpack.c.l.b16 %v694
    %v718 = vunpack.c.l.b16 %v695
    %v719 = vunpack.c.l.b16 %v696
    %v720 = vunpack.c.l.b16 %v697
    %v721 = vpack.c.b16 %v714, %v713
    %v722 = vpack.c.b16 %v716, %v715
    %v723 = vpack.c.b16 %v718, %v717
    %v724 = vpack.c.b16 %v720, %v719
    %v730 = vsel %vm644, %v689, 0
    %732 = vmatprep.subr.bf16.mxu0 0
    %733 = vmatpush1.bf16.msra.mxu0 %v721
    %734 = vmatprep.subr.bf16.mxu0 0
    %735 = vmatpush1.bf16.msra.mxu0 %v722
    %736 = vmatprep.subr.bf16.mxu0 0
    %737 = vmatpush1.bf16.msra.mxu0 %v723
    %738 = vmatprep.subr.bf16.mxu0 0
    %739 = vmatpush1.bf16.msra.mxu0 %v724
    %740 = vmatprep.subr.bf16.mxu0 0
    %741 = vmatpush1.bf16.msra.mxu0 0
    %742 = vmatprep.subr.bf16.mxu0 0
    %743 = vmatpush1.bf16.msra.mxu0 0
    %744 = vmatprep.subr.bf16.mxu0 0
    %745 = vmatpush1.bf16.msra.mxu0 0
    %746 = vmatprep.subr.bf16.mxu0 0
    %747 = vmatpush1.bf16.msra.mxu0 0
    %748 = vmatprep.subr.bf16.mxu0 0
    %749 = vmatpush1.bf16.msra.mxu0 0
    %750 = vmatprep.subr.bf16.mxu0 0
    %751 = vmatpush1.bf16.msra.mxu0 0
    %752 = vmatprep.subr.bf16.mxu0 0
    %753 = vmatpush1.bf16.msra.mxu0 0
    %754 = vmatprep.subr.bf16.mxu0 0
    %755 = vmatpush1.bf16.msra.mxu0 0
    %756 = vmatprep.subr.bf16.mxu0 0
    %757 = vmatpush1.bf16.msra.mxu0 0
    %758 = vmatprep.subr.bf16.mxu0 0
    %759 = vmatpush1.bf16.msra.mxu0 0
    %760 = vmatprep.subr.bf16.mxu0 0
    %761 = vmatpush1.bf16.msra.mxu0 0
    %762 = vmatprep.subr.bf16.mxu0 0
    %763 = vmatpush1.bf16.msra.mxu0 0
    %764 = vmatprep.mubr.bf16.mxu0 0
    %765 = vmatmul.mubr.bf16.gmra.mrb[0].mxu0 %v730
    %v766 = vpop.f32.mrb[0].mxu0
    %v767 = vadd.f32 %v703, %v766
    %v768 = vpop.f32.mrb[0].mxu0
    %v769 = vpop.f32.mrb[0].mxu0
    %v770 = vpop.f32.mrb[0].mxu0
    %771 = vdwg.mxu0
    %v772 = vmax.f32 %v767, 0.0
    %v773 = vpack.c.bf16 %v772, %v772
    %v774 = vld [vmem:[%s11] sm:$0xff]
    %v775 = vld [vmem:[%s11 + $0x8] sm:$0xff]
    %v776 = vld [vmem:[%s11 + $0x10] sm:$0xff]
    %v777 = vld [vmem:[%s11 + $0x18] sm:$0xff]
    %v778 = vld [vmem:[%s11 + $0x20] sm:$0xff]
    %v779 = vld [vmem:[%s11 + $0x28] sm:$0xff]
    %v780 = vld [vmem:[%s11 + $0x30] sm:$0xff]
    %v781 = vld [vmem:[%s11 + $0x38] sm:$0xff]
    %v782 = vld [vmem:[%s11 + $0x40] sm:$0xff]
    %v783 = vld [vmem:[%s11 + $0x48] sm:$0xff]
    %v784 = vld [vmem:[%s11 + $0x50] sm:$0xff]
    %v785 = vld [vmem:[%s11 + $0x58] sm:$0xff]
    %v786 = vld [vmem:[%s11 + $0x60] sm:$0xff]
    %v787 = vld [vmem:[%s11 + $0x68] sm:$0xff]
    %v788 = vld [vmem:[%s11 + $0x70] sm:$0xff]
    %v789 = vld [vmem:[%s11 + $0x78] sm:$0xff]
    %v790 = vld [vmem:[%s12] sm:$0x3]
    %v792 = vlaneseq
    %v793 = vshrl.u32 %v792, 7
    %v794 = vsub.s32 0, %v793
    %v795 = vrot.slane %v790, %v794
    %v796 = vlaneseq
    %v797 = vshrl.u32 %v796, 7
    %v798 = vsub.s32 1, %v797
    %v799 = vrot.slane %v790, %v798
    %v818 = vunpack.c.l.b16 %v774
    %v819 = vunpack.c.h.b16 %v774
    %v820 = vunpack.c.l.b16 %v775
    %v821 = vunpack.c.h.b16 %v775
    %v822 = vunpack.c.l.b16 %v776
    %v823 = vunpack.c.h.b16 %v776
    %v824 = vunpack.c.l.b16 %v777
    %v825 = vunpack.c.h.b16 %v777
    %v826 = vunpack.c.l.b16 %v778
    %v827 = vunpack.c.h.b16 %v778
    %v828 = vunpack.c.l.b16 %v779
    %v829 = vunpack.c.h.b16 %v779
    %v830 = vunpack.c.l.b16 %v780
    %v831 = vunpack.c.h.b16 %v780
    %v832 = vunpack.c.l.b16 %v781
    %v833 = vunpack.c.h.b16 %v781
    %v834 = vunpack.c.l.b16 %v782
    %v835 = vunpack.c.h.b16 %v782
    %v836 = vunpack.c.l.b16 %v783
    %v837 = vunpack.c.h.b16 %v783
    %v838 = vunpack.c.l.b16 %v784
    %v839 = vunpack.c.h.b16 %v784
    %v840 = vunpack.c.l.b16 %v785
    %v841 = vunpack.c.h.b16 %v785
    %v842 = vunpack.c.l.b16 %v786
    %v843 = vunpack.c.h.b16 %v786
    %v844 = vunpack.c.l.b16 %v787
    %v845 = vunpack.c.h.b16 %v787
    %v846 = vunpack.c.l.b16 %v788
    %v847 = vunpack.c.h.b16 %v788
    %v848 = vunpack.c.l.b16 %v789
    %v849 = vunpack.c.h.b16 %v789
    %v850 = vpack.c.b16 %v820, %v818
    %v851 = vpack.c.b16 %v821, %v819
    %v852 = vpack.c.b16 %v824, %v822
    %v853 = vpack.c.b16 %v825, %v823
    %v854 = vpack.c.b16 %v828, %v826
    %v855 = vpack.c.b16 %v829, %v827
    %v856 = vpack.c.b16 %v832, %v830
    %v857 = vpack.c.b16 %v833, %v831
    %v858 = vpack.c.b16 %v836, %v834
    %v859 = vpack.c.b16 %v837, %v835
    %v860 = vpack.c.b16 %v840, %v838
    %v861 = vpack.c.b16 %v841, %v839
    %v862 = vpack.c.b16 %v844, %v842
    %v863 = vpack.c.b16 %v845, %v843
    %v864 = vpack.c.b16 %v848, %v846
    %v865 = vpack.c.b16 %v849, %v847
    %882 = vmatprep.subr.bf16.mxu0 %v851
    %883 = vmatpush1.bf16.msra.mxu0 %v850
    %884 = vmatprep.subr.bf16.mxu0 %v853
    %885 = vmatpush1.bf16.msra.mxu0 %v852
    %886 = vmatprep.subr.bf16.mxu0 %v855
    %887 = vmatpush1.bf16.msra.mxu0 %v854
    %888 = vmatprep.subr.bf16.mxu0 %v857
    %889 = vmatpush1.bf16.msra.mxu0 %v856
    %890 = vmatprep.subr.bf16.mxu0 %v859
    %891 = vmatpush1.bf16.msra.mxu0 %v858
    %892 = vmatprep.subr.bf16.mxu0 %v861
    %893 = vmatpush1.bf16.msra.mxu0 %v860
    %894 = vmatprep.subr.bf16.mxu0 %v863
    %895 = vmatpush1.bf16.msra.mxu0 %v862
    %896 = vmatprep.subr.bf16.mxu0 %v865
    %897 = vmatpush1.bf16.msra.mxu0 %v864
    %898 = vmatprep.subr.bf16.mxu0 0
    %899 = vmatpush1.bf16.msra.mxu0 0
    %900 = vmatprep.subr.bf16.mxu0 0
    %901 = vmatpush1.bf16.msra.mxu0 0
    %902 = vmatprep.subr.bf16.mxu0 0
    %903 = vmatpush1.bf16.msra.mxu0 0
    %904 = vmatprep.subr.bf16.mxu0 0
    %905 = vmatpush1.bf16.msra.mxu0 0
    %906 = vmatprep.subr.bf16.mxu0 0
    %907 = vmatpush1.bf16.msra.mxu0 0
    %908 = vmatprep.subr.bf16.mxu0 0
    %909 = vmatpush1.bf16.msra.mxu0 0
    %910 = vmatprep.subr.bf16.mxu0 0
    %911 = vmatpush1.bf16.msra.mxu0 0
    %912 = vmatprep.subr.bf16.mxu0 0
    %913 = vmatpush1.bf16.msra.mxu0 0
    %914 = vmatprep.mubr.bf16.mxu0 0
    %915 = vmatmul.mubr.bf16.gmra.mrb[0].mxu0 %v773
    %v916 = vpop.f32.mrb[0].mxu0
    %v917 = vadd.f32 %v795, %v916
    %v918 = vpop.f32.mrb[0].mxu0
    %v919 = vadd.f32 %v799, %v918
    %v920 = vpop.f32.mrb[0].mxu0
    %v921 = vpop.f32.mrb[0].mxu0
    %922 = vdwg.mxu0
    %v923 = vmax.f32 %v917, 0.0
    %v924 = vmax.f32 %v919, 0.0
    %v925 = vpack.c.bf16 %v923, %v923
    %v926 = vpack.c.bf16 %v924, %v924
    %v927 = vld [vmem:[#allocation14] sm:$0xf]
    %v928 = vld [vmem:[#allocation14 + $0x4] sm:$0xf]
    %v929 = vld [vmem:[#allocation14 + $0x8] sm:$0xf]
    %v930 = vld [vmem:[#allocation14 + $0xc] sm:$0xf]
    %v931 = vld [vmem:[#allocation14 + $0x10] sm:$0xf]
    %v932 = vld [vmem:[#allocation14 + $0x14] sm:$0xf]
    %v933 = vld [vmem:[#allocation14 + $0x18] sm:$0xf]
    %v934 = vld [vmem:[#allocation14 + $0x1c] sm:$0xf]
    %v935 = vld [vmem:[#allocation14 + $0x20] sm:$0xf]
    %v936 = vld [vmem:[#allocation14 + $0x24] sm:$0xf]
    %v937 = vld [vmem:[#allocation14 + $0x28] sm:$0xf]
    %v938 = vld [vmem:[#allocation14 + $0x2c] sm:$0xf]
    %v939 = vld [vmem:[#allocation14 + $0x30] sm:$0xf]
    %v940 = vld [vmem:[#allocation14 + $0x34] sm:$0xf]
    %v941 = vld [vmem:[#allocation14 + $0x38] sm:$0xf]
    %v942 = vld [vmem:[#allocation14 + $0x3c] sm:$0xf]
    %v943 = vld [vmem:[#allocation14 + $0x40] sm:$0xf]
    %v944 = vld [vmem:[#allocation14 + $0x44] sm:$0xf]
    %v945 = vld [vmem:[#allocation14 + $0x48] sm:$0xf]
    %v946 = vld [vmem:[#allocation14 + $0x4c] sm:$0xf]
    %v947 = vld [vmem:[#allocation14 + $0x50] sm:$0xf]
    %v948 = vld [vmem:[#allocation14 + $0x54] sm:$0xf]
    %v949 = vld [vmem:[#allocation14 + $0x58] sm:$0xf]
    %v950 = vld [vmem:[#allocation14 + $0x5c] sm:$0xf]
    %v951 = vld [vmem:[#allocation14 + $0x60] sm:$0xf]
    %v952 = vld [vmem:[#allocation14 + $0x64] sm:$0xf]
    %v953 = vld [vmem:[#allocation14 + $0x68] sm:$0xf]
    %v954 = vld [vmem:[#allocation14 + $0x6c] sm:$0xf]
    %v955 = vld [vmem:[#allocation14 + $0x70] sm:$0xf]
    %v956 = vld [vmem:[#allocation14 + $0x74] sm:$0xf]
    %v957 = vld [vmem:[#allocation14 + $0x78] sm:$0xf]
    %v958 = vld [vmem:[#allocation14 + $0x7c] sm:$0xf]
    %v959 = vld [vmem:[%s14] sm:$0x1]
    %v961 = vlaneseq
    %v962 = vshrl.u32 %v961, 7
    %v963 = vsub.s32 0, %v962
    %v964 = vrot.slane %v959, %v963
    %v998 = vunpack.c.l.b16 %v927
    %v999 = vunpack.c.l.b16 %v928
    %v1000 = vunpack.c.l.b16 %v929
    %v1001 = vunpack.c.l.b16 %v930
    %v1002 = vunpack.c.l.b16 %v931
    %v1003 = vunpack.c.l.b16 %v932
    %v1004 = vunpack.c.l.b16 %v933
    %v1005 = vunpack.c.l.b16 %v934
    %v1006 = vunpack.c.l.b16 %v935
    %v1007 = vunpack.c.l.b16 %v936
    %v1008 = vunpack.c.l.b16 %v937
    %v1009 = vunpack.c.l.b16 %v938
    %v1010 = vunpack.c.l.b16 %v939
    %v1011 = vunpack.c.l.b16 %v940
    %v1012 = vunpack.c.l.b16 %v941
    %v1013 = vunpack.c.l.b16 %v942
    %v1014 = vunpack.c.l.b16 %v943
    %v1015 = vunpack.c.l.b16 %v944
    %v1016 = vunpack.c.l.b16 %v945
    %v1017 = vunpack.c.l.b16 %v946
    %v1018 = vunpack.c.l.b16 %v947
    %v1019 = vunpack.c.l.b16 %v948
    %v1020 = vunpack.c.l.b16 %v949
    %v1021 = vunpack.c.l.b16 %v950
    %v1022 = vunpack.c.l.b16 %v951
    %v1023 = vunpack.c.l.b16 %v952
    %v1024 = vunpack.c.l.b16 %v953
    %v1025 = vunpack.c.l.b16 %v954
    %v1026 = vunpack.c.l.b16 %v955
    %v1027 = vunpack.c.l.b16 %v956
    %v1028 = vunpack.c.l.b16 %v957
    %v1029 = vunpack.c.l.b16 %v958
    %v1030 = vpack.c.b16 %v999, %v998
    %v1031 = vpack.c.b16 %v1001, %v1000
    %v1032 = vpack.c.b16 %v1003, %v1002
    %v1033 = vpack.c.b16 %v1005, %v1004
    %v1034 = vpack.c.b16 %v1007, %v1006
    %v1035 = vpack.c.b16 %v1009, %v1008
    %v1036 = vpack.c.b16 %v1011, %v1010
    %v1037 = vpack.c.b16 %v1013, %v1012
    %v1038 = vpack.c.b16 %v1015, %v1014
    %v1039 = vpack.c.b16 %v1017, %v1016
    %v1040 = vpack.c.b16 %v1019, %v1018
    %v1041 = vpack.c.b16 %v1021, %v1020
    %v1042 = vpack.c.b16 %v1023, %v1022
    %v1043 = vpack.c.b16 %v1025, %v1024
    %v1044 = vpack.c.b16 %v1027, %v1026
    %v1045 = vpack.c.b16 %v1029, %v1028
    %1062 = vmatprep.subr.bf16.mxu0 0
    %1063 = vmatpush1.bf16.msra.mxu0 %v1030
    %1064 = vmatprep.subr.bf16.mxu0 0
    %1065 = vmatpush1.bf16.msra.mxu0 %v1031
    %1066 = vmatprep.subr.bf16.mxu0 0
    %1067 = vmatpush1.bf16.msra.mxu0 %v1032
    %1068 = vmatprep.subr.bf16.mxu0 0
    %1069 = vmatpush1.bf16.msra.mxu0 %v1033
    %1070 = vmatprep.subr.bf16.mxu0 0
    %1071 = vmatpush1.bf16.msra.mxu0 %v1034
    %1072 = vmatprep.subr.bf16.mxu0 0
    %1073 = vmatpush1.bf16.msra.mxu0 %v1035
    %1074 = vmatprep.subr.bf16.mxu0 0
    %1075 = vmatpush1.bf16.msra.mxu0 %v1036
    %1076 = vmatprep.subr.bf16.mxu0 0
    %1077 = vmatpush1.bf16.msra.mxu0 %v1037
    %1078 = vmatprep.subr.bf16.mxu0 0
    %1079 = vmatpush1.bf16.msra.mxu0 %v1038
    %1080 = vmatprep.subr.bf16.mxu0 0
    %1081 = vmatpush1.bf16.msra.mxu0 %v1039
    %1082 = vmatprep.subr.bf16.mxu0 0
    %1083 = vmatpush1.bf16.msra.mxu0 %v1040
    %1084 = vmatprep.subr.bf16.mxu0 0
    %1085 = vmatpush1.bf16.msra.mxu0 %v1041
    %1086 = vmatprep.subr.bf16.mxu0 0
    %1087 = vmatpush1.bf16.msra.mxu0 %v1042
    %1088 = vmatprep.subr.bf16.mxu0 0
    %1089 = vmatpush1.bf16.msra.mxu0 %v1043
    %1090 = vmatprep.subr.bf16.mxu0 0
    %1091 = vmatpush1.bf16.msra.mxu0 %v1044
    %1092 = vmatprep.subr.bf16.mxu0 0
    %1093 = vmatpush1.bf16.msra.mxu0 %v1045
    %1094 = vmatprep.mubr.bf16.mxu0 %v926
    %1095 = vmatmul.mubr.bf16.gmra.mrb[0].mxu0 %v925
    %v1096 = vpop.f32.mrb[0].mxu0
    %v1097 = vadd.f32 %v964, %v1096
    %v1098 = vpop.f32.mrb[0].mxu0
    %v1099 = vpop.f32.mrb[0].mxu0
    %v1100 = vpop.f32.mrb[0].mxu0
    %1101 = vdwg.mxu0
    %1102 = vst [vmem:[#allocation17] sm:$0xf] %v1097
    // Predicated region
    $region94: #{tpu_custom_call.1} parent=1 // pred_check
      _
    $region95: #{tpu_custom_call.1} parent=1 // pred_check_branch
      %1104 = sbr.rel (0) target = $region97
    $region96: #{tpu_custom_call.1} parent=1 // pred_region
      %s1106 = ssub.s32 64, 64
      %1107 = vsyncadd [#allocation4], %s1106
      %s1109 = sshll.u32 [#allocation16], 4
      %s1110 = int_to_ptr.vmem [resolvable:$true] %s1109
      %1112 = dma.vmem_to_hbm [thread:$0]  %s1110, 64, %s15, [#allocation4]
    $region97: #{tpu_custom_call.1} parent=1 // pred_fallthru
      _
    // Predicated region
    $region98: #{tpu_custom_call.1} parent=1 // pred_check
      _
    $region99: #{tpu_custom_call.1} parent=1 // pred_check_branch
      %1114 = sbr.rel (0) target = $region101
    $region100: #{tpu_custom_call.1} parent=1 // pred_region
      %s1116 = ssub.s32 64, 64
      %1117 = vsyncadd [#allocation18], %s1116
      %s1119 = sshll.u32 [#allocation17], 4
      %s1120 = int_to_ptr.vmem [resolvable:$true] %s1119
      %1122 = dma.vmem_to_hbm [thread:$0]  %s1120, 64, %s16, [#allocation18]
    $region101: #{tpu_custom_call.1} parent=1 // pred_fallthru
      _
    // Predicated region
    $region102: #{tpu_custom_call.1} parent=1 // pred_check
      _
    $region103: #{tpu_custom_call.1} parent=1 // pred_check_branch
      %1124 = sbr.rel (0) target = $region105
    $region104: #{tpu_custom_call.1} parent=1 // pred_region
      %1125 = dma.done [#allocation4], 64
    $region105: #{tpu_custom_call.1} parent=1 // pred_fallthru
      _
    // Predicated region
    $region106: #{tpu_custom_call.1} parent=1 // pred_check
      _
    $region107: #{tpu_custom_call.1} parent=1 // pred_check_branch
      %1127 = sbr.rel (0) target = $region109
    $region108: #{tpu_custom_call.1} parent=1 // pred_region
      %1128 = dma.done [#allocation18], 64
    $region109: #{tpu_custom_call.1} parent=1 // pred_fallthru
      _
    %1129 = vsyncpa [#allocation3], 1
    %1130 = vsyncpa [#allocation6], 1
    %1131 = vsyncpa [#allocation9], 1
    %1132 = vsyncpa [#allocation12], 1
    %1133 = vsyncpa [#allocation15], 1
    %1134 = vsyncpa [#allocation4], 1
    %1135 = vsyncpa [#allocation18], 1

</llo_original>
